<compile_context>
chip_gen: v6e
topology: v6e:2x2x1
jax: 0.10.0
libtpu: 0.0.40
codegen_flags: <defaults>
</compile_context>

<pallas_src>
import functools

import jax
import jax.numpy as jnp
import numpy as np
from jax.experimental import pallas as pl
from jax.experimental.pallas import tpu as pltpu


def _round_up(x, m):
    return (x + m - 1) // m * m


def _pool_kernel(x_ref, sel_ref, o_ref, *, mode, w, lanes, compute_dtype):
    # x_ref:   (bm, lanes) with lanes = g*2*w; group k occupies lanes
    #          [k*2w, k*2w+w) = top image row, [k*2w+w, k*2w+2w) = bottom row.
    # sel_ref: (lanes, g*(w//2)) host-built selection matrix (VMEM resident).
    # o_ref:   (bm, g*(w//2))
    xv = x_ref[...].astype(compute_dtype)
    if mode == "max":
        # vertical max: lane k*2w+t (t<w) <- max(top[t], bot[t])
        v = jnp.maximum(xv, pltpu.roll(xv, shift=lanes - w, axis=1))
        # horizontal max: odd lane 2j+1 <- max(lane 2j, lane 2j+1)
        v = jnp.maximum(v, pltpu.roll(v, shift=1, axis=1))
        # one-hot compaction of lanes k*2w+2j+1 (exact: single 1.0 per column)
        res = jnp.dot(v, sel_ref[...], preferred_element_type=jnp.float32)
    else:  # avg: four-hot 0.25 matmul does the whole 2x2 mean (0.25 is exact)
        res = jnp.dot(xv, sel_ref[...], preferred_element_type=jnp.float32)
    o_ref[...] = res.astype(o_ref.dtype)


def _make_sel(mode, w, w2, g, dtype):
    lanes = g * 2 * w
    n_out = g * w2
    cols = np.arange(n_out)
    k = cols // w2          # output-row group index within a kernel row
    j = cols % w2           # output column within that output row
    sel = np.zeros((lanes, n_out), dtype=np.float32)
    if mode == "max":
        sel[k * 2 * w + 2 * j + 1, cols] = 1.0
    else:
        for dr in (0, 1, w, w + 1):   # top[2j], top[2j+1], bot[2j], bot[2j+1]
            sel[k * 2 * w + 2 * j + dr, cols] = 0.25
    return jnp.asarray(sel, dtype=dtype)


def _pick_block_rows(m_rows, lanes_in, lanes_out, itemsize, pack,
                     vmem_budget_bytes=16 * 1024 * 1024, max_rows=8192):
    """Row-block size from a VMEM budget (fits the 32 MiB scoped default on v7x)."""
    li = _round_up(lanes_in, 128)
    lo = _round_up(lanes_out, 128)
    # 2x double-buffered in/out pipeline buffers + ~2 live f32 intermediates.
    bytes_per_row = 2 * itemsize * (li + lo) + 4 * (2 * li + lo)
    bm = vmem_budget_bytes // max(1, bytes_per_row)
    bm = min(bm, max_rows, m_rows)
    bm = max(pack, (bm // pack) * pack)
    # Amortize the ~0.35us/step pipeline overhead: >= ~1 MiB of input per step...
    min_rows = max(pack, _round_up((1 << 20) // max(1, itemsize * li), pack))
    # ...but prefer >= 8 grid steps (>= 4 per v7x TensorCore) so DMA/compute overlap.
    while pl.cdiv(m_rows, bm) < 8 and bm >= 2 * min_rows:
        bm = max(pack, ((bm // 2) // pack) * pack)
    if m_rows <= bm:
        return m_rows           # single full block (full-extent dims always legal)
    return bm


def pool_block(x, mode="max", block_rows=None):
    """2x2 pooling, stride 2 (nn.MaxPool2d(2) / nn.AvgPool2d(2)) on NCHW."""
    assert mode in ("max", "avg")
    n, c, h, w_full = x.shape
    h2, w2 = h // 2, w_full // 2
    assert h2 > 0 and w2 > 0
    if (h % 2) or (w_full % 2):
        x = x[:, :, : 2 * h2, : 2 * w2]   # PyTorch pooling drops odd edges
    w = 2 * w2
    m = n * c * h2

    # Lane-dense output grouping: g output rows per kernel row.
    if w2 >= 128:
        g = 1
    else:
        g = -(-128 // w2)                 # ceil(128 / w2)
        while g > 1 and m % g != 0:
            g -= 1
    m_g = m // g
    lanes = g * 2 * w
    n_out = g * w2

    x2 = x.reshape(m_g, lanes)            # pure contiguous view

    if x.dtype in (jnp.dtype(jnp.float32), jnp.dtype(jnp.bfloat16)):
        compute_dtype = x.dtype            # bf16 one-hot / 0.25 matmuls are exact
    else:
        # TODO(synk): integer dtypes round-trip through f32 (exact for |x| < 2^24).
        compute_dtype = jnp.float32
    sel = _make_sel(mode, w, w2, g, compute_dtype)

    itemsize = jnp.dtype(x.dtype).itemsize
    pack = max(8, 32 // itemsize)          # sublane packing: f32->8, bf16->16, int8->32
    if block_rows is None:
        bm = _pick_block_rows(m_g, lanes, n_out, itemsize, pack)
    else:
        bm = int(block_rows)
        bm = m_g if bm >= m_g else max(pack, (bm // pack) * pack)

    grid = (pl.cdiv(m_g, bm),)

    cost = pl.CostEstimate(
        flops=2 * m_g * lanes * n_out + (4 * m_g * lanes if mode == "max" else 0),
        transcendentals=0,
        bytes_accessed=(x2.size * itemsize
                        + sel.size * sel.dtype.itemsize
                        + m_g * n_out * itemsize),
    )

    out2 = pl.pallas_call(
        functools.partial(_pool_kernel, mode=mode, w=w, lanes=lanes,
                          compute_dtype=compute_dtype),
        out_shape=jax.ShapeDtypeStruct((m_g, n_out), x.dtype),
        grid_spec=pltpu.PrefetchScalarGridSpec(
            num_scalar_prefetch=0,
            grid=grid,
            in_specs=[
                pl.BlockSpec((bm, lanes), lambda i: (i, 0)),
                # constant block index -> DMA'd once, stays VMEM-resident
                pl.BlockSpec((lanes, n_out), lambda i: (0, 0)),
            ],
            out_specs=pl.BlockSpec((bm, n_out), lambda i: (i, 0)),
        ),
        compiler_params=pltpu.CompilerParams(
            dimension_semantics=("parallel",),
            vmem_limit_bytes=32 * 1024 * 1024,
        ),
        cost_estimate=cost,
    )(x2, sel)

    # (m_g, g*w2) flattens in exactly NCHW output order.
    return out2.reshape(n, c, h2, w2)


if __name__ == "__main__":
    key = jax.random.PRNGKey(0)
    N, C, H, W = 2, 4, 16, 16
    x = jax.random.normal(key, (N, C, H, W), dtype=jnp.float32)

    # Default PoolBlock mode is 'max' (nn.MaxPool2d(2)).
    y = jax.block_until_ready(pool_block(x, mode="max"))
    assert y.shape == (N, C, H // 2, W // 2)
    ref = x.reshape(N, C, H // 2, 2, W // 2, 2).max(axis=(3, 5))
    np.testing.assert_allclose(np.asarray(y), np.asarray(ref), rtol=1e-6, atol=1e-6)

    # 'avg' mode (nn.AvgPool2d(2)).
    y_avg = jax.block_until_ready(pool_block(x, mode="avg"))
    ref_avg = x.reshape(N, C, H // 2, 2, W // 2, 2).mean(axis=(3, 5))
    np.testing.assert_allclose(np.asarray(y_avg), np.asarray(ref_avg), rtol=1e-5, atol=1e-5)

    # Ragged grid (m_g % block_rows != 0) with output-row grouping (g=2).
    x3 = jax.random.normal(jax.random.PRNGKey(1), (2, 2, 24, 128), dtype=jnp.float32)
    y3 = jax.block_until_ready(pool_block(x3, mode="max", block_rows=16))
    ref3 = x3.reshape(2, 2, 12, 2, 64, 2).max(axis=(3, 5))
    np.testing.assert_allclose(np.asarray(y3), np.asarray(ref3), rtol=1e-6, atol=1e-6)

    y4 = jax.block_until_ready(pool_block(x3, mode="avg", block_rows=16))
    ref4 = x3.reshape(2, 2, 12, 2, 64, 2).mean(axis=(3, 5))
    np.testing.assert_allclose(np.asarray(y4), np.asarray(ref4), rtol=1e-5, atol=1e-5)

    print("KERNEL_OK")
</pallas_src>

<mosaic_0001>
module attributes {stable_mosaic.version = 11 : i64} {
  func.func @_pool_kernel(%arg0: i32, %arg1: memref<4x512xf32, #tpu.memory_space<vmem>>, %arg2: memref<512x128xf32, #tpu.memory_space<vmem>>, %arg3: memref<4x128xf32, #tpu.memory_space<vmem>>) attributes {dimension_semantics = [#tpu.dimension_semantics<parallel>], iteration_bounds = array<i64: 1>, scalar_prefetch = 0 : i64, scratch_operands = 0 : i64, tpu.core_type = #tpu.core_type<tc>, window_params = [{transform_indices = @transform_0, window_bounds = array<i64: 4, 512>}, {pipeline_mode = #tpu.pipeline_mode<synchronous>, transform_indices = @transform_1, window_bounds = array<i64: 512, 128>}, {transform_indices = @transform_2, window_bounds = array<i64: 4, 128>}]} {
    %c0 = arith.constant 0 : index
    %c0_0 = arith.constant 0 : index
    %0 = vector.load %arg1[%c0, %c0_0] : memref<4x512xf32, #tpu.memory_space<vmem>>, vector<4x512xf32>
    %c496_i32 = arith.constant 496 : i32
    %1 = tpu.dynamic_rotate %0 by %c496_i32 dim 1 : vector<4x512xf32>, i32 -> vector<4x512xf32>
    %2 = arith.maximumf %0, %1 : vector<4x512xf32>
    %c1_i32 = arith.constant 1 : i32
    %3 = tpu.dynamic_rotate %2 by %c1_i32 dim 1 : vector<4x512xf32>, i32 -> vector<4x512xf32>
    %4 = arith.maximumf %2, %3 : vector<4x512xf32>
    %c0_1 = arith.constant 0 : index
    %c0_2 = arith.constant 0 : index
    %5 = vector.load %arg2[%c0_1, %c0_2] : memref<512x128xf32, #tpu.memory_space<vmem>>, vector<512x128xf32>
    %cst = arith.constant dense<0.000000e+00> : vector<4x128xf32>
    %6 = tpu.matmul %4, %5, %cst {dimension_numbers = #tpu.dot_dimension_numbers<[1], [0], [0], [1], [0, 0, 1, 1], [], []>} : vector<4x512xf32>, vector<512x128xf32>, vector<4x128xf32> -> vector<4x128xf32>
    %c0_3 = arith.constant 0 : index
    %c0_4 = arith.constant 0 : index
    %7 = vector.load %arg3[%c0_3, %c0_4] : memref<4x128xf32, #tpu.memory_space<vmem>>, vector<4x128xf32>
    tpu.vector_store %arg3[%c0_3, %c0_4], %6 {strides = array<i32>} : memref<4x128xf32, #tpu.memory_space<vmem>>, vector<4x128xf32>,
    return
  }
  func.func @transform_0(%arg0: i32) -> (i32, i32) {
    %c0_i32 = arith.constant 0 : i32
    %c0_i32_0 = arith.constant 0 : i32
    return %arg0, %c0_i32 : i32, i32
  }
  func.func @transform_1(%arg0: i32) -> (i32, i32) {
    %c0_i32 = arith.constant 0 : i32
    %c0_i32_0 = arith.constant 0 : i32
    %c0_i32_1 = arith.constant 0 : i32
    return %c0_i32, %c0_i32_0 : i32, i32
  }
  func.func @transform_2(%arg0: i32) -> (i32, i32) {
    %c0_i32 = arith.constant 0 : i32
    %c0_i32_0 = arith.constant 0 : i32
    return %arg0, %c0_i32 : i32, i32
  }
}

</mosaic_0001>

<llo_original>
// kernel: tpu_custom_call.1
$region0: #{tpu_custom_call.1}
  #allocation0 [shape = 'u32[]', space=smem, size = 0x4, offset = 0x4, fixed_abs, tag = 'smem constant byte address 0x4 - core index']
  #allocation1 [shape = 'u32[144,128]{1,0:T(1,128)}', space=vmem, size = 0x12000, scoped, tag = 'internal scratch']
  %s0 = inlined_call_operand.hbm [shape: f32[4,512], index: 0, kind: input, shape index: {}]
  %s1 = inlined_call_operand.hbm [shape: f32[512,128], index: 1, kind: input, shape index: {}]
  %s2 = inlined_call_operand.hbm [shape: f32[4,128], index: 2, kind: output, shape index: {}]
  %s3 = sld [smem:[#allocation0]]
  $region26: #{tpu_custom_call.1} parent=0
    _
  %s5 = ssub.s32 1, %s3
  %s6 = scalar_select 0, %s5, %s3
  $region1: #{tpu_custom_call.1} parent=0
    #allocation2 [shape = 'u8[8192]{0}', space=vmem, size = 0x2000, scoped, tag = 'input window, operand 0, single buffered']
    #allocation3 [shape = 's32[1]{0}', space=sflag, size = 0x4, scoped, tag = 'scoped memory for tpu_custom_call.1']
    #allocation4 [shape = 's32[1]{0}', space=sflag, size = 0x4, scoped, tag = 'scoped memory for tpu_custom_call.1']
    #allocation5 [shape = 'u8[262144]{0}', space=vmem, size = 0x40000, scoped, tag = 'input window, operand 1, single buffered']
    #allocation6 [shape = 's32[1]{0}', space=sflag, size = 0x4, scoped, tag = 'scoped memory for tpu_custom_call.1']
    #allocation7 [shape = 'u8[2048]{0}', space=vmem, size = 0x800, scoped, tag = 'output window, operand 0, single buffered']
    %7 = vsyncpa [#allocation3], 0
    %8 = vsyncpa [#allocation6], 0
    %9 = vsyncpa [#allocation4], 0
    // Predicated region
    $region2: #{tpu_custom_call.1} parent=1 // pred_check
      _
    $region3: #{tpu_custom_call.1} parent=1 // pred_check_branch
      %11 = sbr.rel (0) target = $region5
    $region4: #{tpu_custom_call.1} parent=1 // pred_region
      %s13 = ssub.s32 256, 256
      %14 = vsyncadd [#allocation3], %s13
      %s16 = sshll.u32 [#allocation2], 4
      %s17 = int_to_ptr.vmem [resolvable:$true] %s16
      %19 = dma.hbm_to_vmem [thread:$0]  %s0, 256, %s17, [#allocation3]
    $region5: #{tpu_custom_call.1} parent=1 // pred_fallthru
      _
    // Predicated region
    $region6: #{tpu_custom_call.1} parent=1 // pred_check
      _
    $region7: #{tpu_custom_call.1} parent=1 // pred_check_branch
      %21 = sbr.rel (0) target = $region9
    $region8: #{tpu_custom_call.1} parent=1 // pred_region
      %s23 = ssub.s32 8192, 8192
      %24 = vsyncadd [#allocation6], %s23
      %s25 = sshll.u32 [#allocation5], 4
      %s26 = int_to_ptr.vmem [resolvable:$true] %s25
      %31 = dma.hbm_to_vmem [thread:$0]  %s1, 8192, %s26, [#allocation6], 128, 128, 8
    $region9: #{tpu_custom_call.1} parent=1 // pred_fallthru
      _
    // Predicated region
    $region10: #{tpu_custom_call.1} parent=1 // pred_check
      _
    $region11: #{tpu_custom_call.1} parent=1 // pred_check_branch
      %33 = sbr.rel (0) target = $region13
    $region12: #{tpu_custom_call.1} parent=1 // pred_region
      %34 = dma.done [#allocation3], 256
    $region13: #{tpu_custom_call.1} parent=1 // pred_fallthru
      _
    // Predicated region
    $region14: #{tpu_custom_call.1} parent=1 // pred_check
      _
    $region15: #{tpu_custom_call.1} parent=1 // pred_check_branch
      %36 = sbr.rel (0) target = $region17
    $region16: #{tpu_custom_call.1} parent=1 // pred_region
      %37 = dma.done [#allocation6], 8192
    $region17: #{tpu_custom_call.1} parent=1 // pred_fallthru
      _
    %v38 = vld [vmem:[#allocation2] sm:$0xff]
    %v39 = vld [vmem:[#allocation2 + $0x8] sm:$0xff]
    %v42 = vcombine.high %v38, %v38
    %v43 = vcombine.high %v39, %v39
    %46 = vrot.lane.b32.xlu0 %v38, 112
    %v47 = vpop.permute.xlu0 %46
    %48 = vrot.lane.b32.xlu0 %v42, 112
    %v49 = vpop.permute.xlu0 %48
    %50 = vrot.lane.b32.xlu0 %v39, 112
    %v51 = vpop.permute.xlu0 %50
    %52 = vrot.lane.b32.xlu0 %v43, 112
    %v53 = vpop.permute.xlu0 %52
    %v54 = vlaneseq
    %v55 = vand.u32 %v54, 127
    %vm56 = vcmp.lt.s32.totalorder %v55, 112
    %v57 = vsel %vm56, %v51, %v53
    %v58 = vsel %vm56, %v49, %v51
    %v59 = vsel %vm56, %v47, %v49
    %v60 = vsel %vm56, %v53, %v47
    %v65 = vcombine.low %v59, %v58
    %v66 = vcombine.low %v57, %v60
    %v69 = vmax.f32 %v38, %v65
    %v70 = vmax.f32 %v39, %v66
    %v73 = vcombine.high %v69, %v69
    %v74 = vcombine.high %v70, %v70
    %77 = vrot.lane.b32.xlu0 %v69, 1
    %v78 = vpop.permute.xlu0 %77
    %79 = vrot.lane.b32.xlu0 %v73, 1
    %v80 = vpop.permute.xlu0 %79
    %81 = vrot.lane.b32.xlu0 %v70, 1
    %v82 = vpop.permute.xlu0 %81
    %83 = vrot.lane.b32.xlu0 %v74, 1
    %v84 = vpop.permute.xlu0 %83
    %vm85 = vcmp.lt.s32.totalorder %v55, 1
    %v86 = vsel %vm85, %v82, %v84
    %v87 = vsel %vm85, %v80, %v82
    %v88 = vsel %vm85, %v78, %v80
    %v89 = vsel %vm85, %v84, %v78
    %v94 = vcombine.low %v89, %v88
    %v95 = vcombine.low %v87, %v86
    %v98 = vmax.f32 %v69, %v94
    %v99 = vmax.f32 %v70, %v95
    %v100 = vld [vmem:[#allocation5] sm:$0xff]
    %v101 = vld [vmem:[#allocation5 + $0x8] sm:$0xff]
    %v102 = vld [vmem:[#allocation5 + $0x10] sm:$0xff]
    %v103 = vld [vmem:[#allocation5 + $0x18] sm:$0xff]
    %v104 = vld [vmem:[#allocation5 + $0x20] sm:$0xff]
    %v105 = vld [vmem:[#allocation5 + $0x28] sm:$0xff]
    %v106 = vld [vmem:[#allocation5 + $0x30] sm:$0xff]
    %v107 = vld [vmem:[#allocation5 + $0x38] sm:$0xff]
    %v108 = vld [vmem:[#allocation5 + $0x40] sm:$0xff]
    %v109 = vld [vmem:[#allocation5 + $0x48] sm:$0xff]
    %v110 = vld [vmem:[#allocation5 + $0x50] sm:$0xff]
    %v111 = vld [vmem:[#allocation5 + $0x58] sm:$0xff]
    %v112 = vld [vmem:[#allocation5 + $0x60] sm:$0xff]
    %v113 = vld [vmem:[#allocation5 + $0x68] sm:$0xff]
    %v114 = vld [vmem:[#allocation5 + $0x70] sm:$0xff]
    %v115 = vld [vmem:[#allocation5 + $0x78] sm:$0xff]
    %v116 = vld [vmem:[#allocation5 + $0x80] sm:$0xff]
    %v117 = vld [vmem:[#allocation5 + $0x88] sm:$0xff]
    %v118 = vld [vmem:[#allocation5 + $0x90] sm:$0xff]
    %v119 = vld [vmem:[#allocation5 + $0x98] sm:$0xff]
    %v120 = vld [vmem:[#allocation5 + $0xa0] sm:$0xff]
    %v121 = vld [vmem:[#allocation5 + $0xa8] sm:$0xff]
    %v122 = vld [vmem:[#allocation5 + $0xb0] sm:$0xff]
    %v123 = vld [vmem:[#allocation5 + $0xb8] sm:$0xff]
    %v124 = vld [vmem:[#allocation5 + $0xc0] sm:$0xff]
    %v125 = vld [vmem:[#allocation5 + $0xc8] sm:$0xff]
    %v126 = vld [vmem:[#allocation5 + $0xd0] sm:$0xff]
    %v127 = vld [vmem:[#allocation5 + $0xd8] sm:$0xff]
    %v128 = vld [vmem:[#allocation5 + $0xe0] sm:$0xff]
    %v129 = vld [vmem:[#allocation5 + $0xe8] sm:$0xff]
    %v130 = vld [vmem:[#allocation5 + $0xf0] sm:$0xff]
    %v131 = vld [vmem:[#allocation5 + $0xf8] sm:$0xff]
    %v132 = vld [vmem:[#allocation5 + $0x100] sm:$0xff]
    %v133 = vld [vmem:[#allocation5 + $0x108] sm:$0xff]
    %v134 = vld [vmem:[#allocation5 + $0x110] sm:$0xff]
    %v135 = vld [vmem:[#allocation5 + $0x118] sm:$0xff]
    %v136 = vld [vmem:[#allocation5 + $0x120] sm:$0xff]
    %v137 = vld [vmem:[#allocation5 + $0x128] sm:$0xff]
    %v138 = vld [vmem:[#allocation5 + $0x130] sm:$0xff]
    %v139 = vld [vmem:[#allocation5 + $0x138] sm:$0xff]
    %v140 = vld [vmem:[#allocation5 + $0x140] sm:$0xff]
    %v141 = vld [vmem:[#allocation5 + $0x148] sm:$0xff]
    %v142 = vld [vmem:[#allocation5 + $0x150] sm:$0xff]
    %v143 = vld [vmem:[#allocation5 + $0x158] sm:$0xff]
    %v144 = vld [vmem:[#allocation5 + $0x160] sm:$0xff]
    %v145 = vld [vmem:[#allocation5 + $0x168] sm:$0xff]
    %v146 = vld [vmem:[#allocation5 + $0x170] sm:$0xff]
    %v147 = vld [vmem:[#allocation5 + $0x178] sm:$0xff]
    %v148 = vld [vmem:[#allocation5 + $0x180] sm:$0xff]
    %v149 = vld [vmem:[#allocation5 + $0x188] sm:$0xff]
    %v150 = vld [vmem:[#allocation5 + $0x190] sm:$0xff]
    %v151 = vld [vmem:[#allocation5 + $0x198] sm:$0xff]
    %v152 = vld [vmem:[#allocation5 + $0x1a0] sm:$0xff]
    %v153 = vld [vmem:[#allocation5 + $0x1a8] sm:$0xff]
    %v154 = vld [vmem:[#allocation5 + $0x1b0] sm:$0xff]
    %v155 = vld [vmem:[#allocation5 + $0x1b8] sm:$0xff]
    %v156 = vld [vmem:[#allocation5 + $0x1c0] sm:$0xff]
    %v157 = vld [vmem:[#allocation5 + $0x1c8] sm:$0xff]
    %v158 = vld [vmem:[#allocation5 + $0x1d0] sm:$0xff]
    %v159 = vld [vmem:[#allocation5 + $0x1d8] sm:$0xff]
    %v160 = vld [vmem:[#allocation5 + $0x1e0] sm:$0xff]
    %v161 = vld [vmem:[#allocation5 + $0x1e8] sm:$0xff]
    %v162 = vld [vmem:[#allocation5 + $0x1f0] sm:$0xff]
    %v163 = vld [vmem:[#allocation5 + $0x1f8] sm:$0xff]
    %v166 = vcombine.high %v98, %v98
    %v167 = vcombine.high %v99, %v99
    %170 = vmatprep.subr.mxu0 0.0
    %171 = vmatpush1.msra.mxu0 %v115
    %172 = vmatprep.subr.mxu0 0.0
    %173 = vmatpush1.msra.mxu0 %v114
    %174 = vmatprep.subr.mxu0 0.0
    %175 = vmatpush1.msra.mxu0 %v113
    %176 = vmatprep.subr.mxu0 0.0
    %177 = vmatpush1.msra.mxu0 %v112
    %178 = vmatprep.subr.mxu0 0.0
    %179 = vmatpush1.msra.mxu0 %v111
    %180 = vmatprep.subr.mxu0 0.0
    %181 = vmatpush1.msra.mxu0 %v110
    %182 = vmatprep.subr.mxu0 0.0
    %183 = vmatpush1.msra.mxu0 %v109
    %184 = vmatprep.subr.mxu0 0.0
    %185 = vmatpush1.msra.mxu0 %v108
    %186 = vmatprep.subr.mxu0 0.0
    %187 = vmatpush1.msra.mxu0 %v107
    %188 = vmatprep.subr.mxu0 0.0
    %189 = vmatpush1.msra.mxu0 %v106
    %190 = vmatprep.subr.mxu0 0.0
    %191 = vmatpush1.msra.mxu0 %v105
    %192 = vmatprep.subr.mxu0 0.0
    %193 = vmatpush1.msra.mxu0 %v104
    %194 = vmatprep.subr.mxu0 0.0
    %195 = vmatpush1.msra.mxu0 %v103
    %196 = vmatprep.subr.mxu0 0.0
    %197 = vmatpush1.msra.mxu0 %v102
    %198 = vmatprep.subr.mxu0 0.0
    %199 = vmatpush1.msra.mxu0 %v101
    %200 = vmatprep.subr.mxu0 0.0
    %201 = vmatpush1.msra.mxu0 %v100
    %202 = vmatprep.subr.mxu0 0.0
    %203 = vmatpush2.msra.mxu0 %v131
    %204 = vmatprep.subr.mxu0 0.0
    %205 = vmatpush2.msra.mxu0 %v130
    %206 = vmatprep.subr.mxu0 0.0
    %207 = vmatpush2.msra.mxu0 %v129
    %208 = vmatprep.subr.mxu0 0.0
    %209 = vmatpush2.msra.mxu0 %v128
    %210 = vmatprep.subr.mxu0 0.0
    %211 = vmatpush2.msra.mxu0 %v127
    %212 = vmatprep.subr.mxu0 0.0
    %213 = vmatpush2.msra.mxu0 %v126
    %214 = vmatprep.subr.mxu0 0.0
    %215 = vmatpush2.msra.mxu0 %v125
    %216 = vmatprep.subr.mxu0 0.0
    %217 = vmatpush2.msra.mxu0 %v124
    %218 = vmatprep.subr.mxu0 0.0
    %219 = vmatpush2.msra.mxu0 %v123
    %220 = vmatprep.subr.mxu0 0.0
    %221 = vmatpush2.msra.mxu0 %v122
    %222 = vmatprep.subr.mxu0 0.0
    %223 = vmatpush2.msra.mxu0 %v121
    %224 = vmatprep.subr.mxu0 0.0
    %225 = vmatpush2.msra.mxu0 %v120
    %226 = vmatprep.subr.mxu0 0.0
    %227 = vmatpush2.msra.mxu0 %v119
    %228 = vmatprep.subr.mxu0 0.0
    %229 = vmatpush2.msra.mxu0 %v118
    %230 = vmatprep.subr.mxu0 0.0
    %231 = vmatpush2.msra.mxu0 %v117
    %232 = vmatprep.subr.mxu0 0.0
    %233 = vmatpush2.msra.mxu0 %v116
    %234 = vmatprep.mubr.f32.mxu0 %v166
    %235 = vmatmul.mubr.f32.gmra.mxu0 %v98
    %v236 = vpop.f32.mrf.mxu0
    %v237 = vadd.f32 0.0, %v236
    %v238 = vpop.f32.mrf.mxu0
    %239 = vdwg.mxu0
    %240 = vmatprep.subr.mxu0 0.0
    %241 = vmatpush1.msra.mxu0 %v147
    %242 = vmatprep.subr.mxu0 0.0
    %243 = vmatpush1.msra.mxu0 %v146
    %244 = vmatprep.subr.mxu0 0.0
    %245 = vmatpush1.msra.mxu0 %v145
    %246 = vmatprep.subr.mxu0 0.0
    %247 = vmatpush1.msra.mxu0 %v144
    %248 = vmatprep.subr.mxu0 0.0
    %249 = vmatpush1.msra.mxu0 %v143
    %250 = vmatprep.subr.mxu0 0.0
    %251 = vmatpush1.msra.mxu0 %v142
    %252 = vmatprep.subr.mxu0 0.0
    %253 = vmatpush1.msra.mxu0 %v141
    %254 = vmatprep.subr.mxu0 0.0
    %255 = vmatpush1.msra.mxu0 %v140
    %256 = vmatprep.subr.mxu0 0.0
    %257 = vmatpush1.msra.mxu0 %v139
    %258 = vmatprep.subr.mxu0 0.0
    %259 = vmatpush1.msra.mxu0 %v138
    %260 = vmatprep.subr.mxu0 0.0
    %261 = vmatpush1.msra.mxu0 %v137
    %262 = vmatprep.subr.mxu0 0.0
    %263 = vmatpush1.msra.mxu0 %v136
    %264 = vmatprep.subr.mxu0 0.0
    %265 = vmatpush1.msra.mxu0 %v135
    %266 = vmatprep.subr.mxu0 0.0
    %267 = vmatpush1.msra.mxu0 %v134
    %268 = vmatprep.subr.mxu0 0.0
    %269 = vmatpush1.msra.mxu0 %v133
    %270 = vmatprep.subr.mxu0 0.0
    %271 = vmatpush1.msra.mxu0 %v132
    %272 = vmatprep.subr.mxu0 0.0
    %273 = vmatpush2.msra.mxu0 %v163
    %274 = vmatprep.subr.mxu0 0.0
    %275 = vmatpush2.msra.mxu0 %v162
    %276 = vmatprep.subr.mxu0 0.0
    %277 = vmatpush2.msra.mxu0 %v161
    %278 = vmatprep.subr.mxu0 0.0
    %279 = vmatpush2.msra.mxu0 %v160
    %280 = vmatprep.subr.mxu0 0.0
    %281 = vmatpush2.msra.mxu0 %v159
    %282 = vmatprep.subr.mxu0 0.0
    %283 = vmatpush2.msra.mxu0 %v158
    %284 = vmatprep.subr.mxu0 0.0
    %285 = vmatpush2.msra.mxu0 %v157
    %286 = vmatprep.subr.mxu0 0.0
    %287 = vmatpush2.msra.mxu0 %v156
    %288 = vmatprep.subr.mxu0 0.0
    %289 = vmatpush2.msra.mxu0 %v155
    %290 = vmatprep.subr.mxu0 0.0
    %291 = vmatpush2.msra.mxu0 %v154
    %292 = vmatprep.subr.mxu0 0.0
    %293 = vmatpush2.msra.mxu0 %v153
    %294 = vmatprep.subr.mxu0 0.0
    %295 = vmatpush2.msra.mxu0 %v152
    %296 = vmatprep.subr.mxu0 0.0
    %297 = vmatpush2.msra.mxu0 %v151
    %298 = vmatprep.subr.mxu0 0.0
    %299 = vmatpush2.msra.mxu0 %v150
    %300 = vmatprep.subr.mxu0 0.0
    %301 = vmatpush2.msra.mxu0 %v149
    %302 = vmatprep.subr.mxu0 0.0
    %303 = vmatpush2.msra.mxu0 %v148
    %304 = vmatprep.mubr.f32.mxu0 %v167
    %305 = vmatmul.mubr.f32.gmra.mxu0 %v99
    %v306 = vpop.f32.mrf.mxu0
    %v307 = vadd.f32 %v237, %v306
    %v308 = vpop.f32.mrf.mxu0
    %309 = vdwg.mxu0
    %310 = vst [vmem:[#allocation7] sm:$0xf] %v307
    // Predicated region
    $region18: #{tpu_custom_call.1} parent=1 // pred_check
      _
    $region19: #{tpu_custom_call.1} parent=1 // pred_check_branch
      %312 = sbr.rel (0) target = $region21
    $region20: #{tpu_custom_call.1} parent=1 // pred_region
      %s314 = ssub.s32 64, 64
      %315 = vsyncadd [#allocation4], %s314
      %s317 = sshll.u32 [#allocation7], 4
      %s318 = int_to_ptr.vmem [resolvable:$true] %s317
      %320 = dma.vmem_to_hbm [thread:$0]  %s318, 64, %s2, [#allocation4]
    $region21: #{tpu_custom_call.1} parent=1 // pred_fallthru
      _
    // Predicated region
    $region22: #{tpu_custom_call.1} parent=1 // pred_check
      _
    $region23: #{tpu_custom_call.1} parent=1 // pred_check_branch
      %322 = sbr.rel (0) target = $region25
    $region24: #{tpu_custom_call.1} parent=1 // pred_region
      %323 = dma.done [#allocation4], 64
    $region25: #{tpu_custom_call.1} parent=1 // pred_fallthru
      _
    %324 = vsyncpa [#allocation3], 1
    %325 = vsyncpa [#allocation6], 1
    %326 = vsyncpa [#allocation4], 1

</llo_original>
